<compile_context>
chip_gen: v7x
topology: tpu7x:2x2x1
jax: 0.10.0
libtpu: 0.0.40
codegen_flags: <defaults>
</compile_context>

<pallas_src>
import jax
import jax.numpy as jnp
from jax.experimental import pallas as pl
from jax.experimental.pallas import tpu as pltpu


def lm_head_kernel(x_ref, w_ref, b_ref, o_ref):
    """One (tm, tn) logits tile: full-K matmul + fused bias add.

    x_ref: (tm, H)   activations
    w_ref: (tn, H)   weight rows in PyTorch (vocab, hidden) layout
    b_ref: (1, tn)   bias slice
    o_ref: (tm, tn)  logits tile
    """
    acc = jax.lax.dot_general(
        x_ref[...],
        w_ref[...],
        dimension_numbers=(((1,), (1,)), ((), ())),  # contract on H (trans_b)
        preferred_element_type=jnp.float32,
    )
    o_ref[...] = (acc + b_ref[...].astype(jnp.float32)).astype(o_ref.dtype)


def _round_up(x, m):
    return ((x + m - 1) // m) * m


def bert_generation_lm_head(hidden_states, weight, bias, *, tm=256, tn=1024):
    """hidden_states: (B, S, H); weight: (V, H) [PyTorch layout]; bias: (V,)."""
    B, S, H = hidden_states.shape
    V, Hw = weight.shape
    assert Hw == H, "weight must be (vocab_size, hidden_size)"

    out_dtype = hidden_states.dtype
    M = B * S

    # Clamp tiles to the problem (keeps toy shapes from over-padding) while
    # staying (8, 128)-aligned so stores are lane-dense and unmasked.
    tm = min(tm, _round_up(M, 8))
    tn = min(tn, _round_up(V, 128))

    Mp = _round_up(M, tm)
    Vp = _round_up(V, tn)

    x = hidden_states.reshape(M, H)
    if Mp != M:
        x = jnp.pad(x, ((0, Mp - M), (0, 0)))

    w = weight                      # keep (V, H); no full-weight transpose in HBM
    b2 = bias.reshape(1, V)
    if Vp != V:
        w = jnp.pad(w, ((0, Vp - V), (0, 0)))
        b2 = jnp.pad(b2, ((0, 0), (0, Vp - V)))

    grid = (Mp // tm, Vp // tn)

    x_bytes = x.dtype.itemsize
    w_bytes = w.dtype.itemsize
    b_bytes = b2.dtype.itemsize
    o_bytes = jnp.dtype(out_dtype).itemsize

    # Double-buffered input/output tile footprint + headroom, clamped for v7x.
    vmem_limit = min(
        2 * (tm * H * x_bytes + tn * H * w_bytes + tn * b_bytes + tm * tn * o_bytes)
        + (8 << 20),
        64 << 20,
    )

    cost = pl.CostEstimate(
        flops=2 * Mp * H * Vp,
        transcendentals=0,
        bytes_accessed=(
            Mp * H * x_bytes + Vp * H * w_bytes + Vp * b_bytes + Mp * Vp * o_bytes
        ),
    )

    out = pl.pallas_call(
        lm_head_kernel,
        out_shape=jax.ShapeDtypeStruct((Mp, Vp), out_dtype),
        grid_spec=pltpu.PrefetchScalarGridSpec(
            num_scalar_prefetch=0,
            grid=grid,
            in_specs=[
                pl.BlockSpec((tm, H), lambda i, j: (i, 0)),   # activations tile
                pl.BlockSpec((tn, H), lambda i, j: (j, 0)),   # weight rows tile
                pl.BlockSpec((1, tn), lambda i, j: (0, j)),   # bias tile
            ],
            out_specs=pl.BlockSpec((tm, tn), lambda i, j: (i, j)),
        ),
        compiler_params=pltpu.CompilerParams(
            dimension_semantics=("parallel", "parallel"),
            vmem_limit_bytes=vmem_limit,
        ),
        cost_estimate=cost,
    )(x, w, b2)

    return out[:M, :V].reshape(B, S, V)


if __name__ == "__main__":
    # Small config consistent with the module: hidden_size=32, vocab_size=256.
    batch, seq, hidden, vocab = 2, 8, 32, 256

    key = jax.random.PRNGKey(0)
    k_x, k_w = jax.random.split(key)

    hidden_states = jax.random.normal(k_x, (batch, seq, hidden), dtype=jnp.float32)
    # nn.Linear weight shape is (vocab_size, hidden_size).
    decoder_weight = jax.random.normal(k_w, (vocab, hidden), dtype=jnp.float32) * 0.02
    # Module initializes bias to zeros.
    lm_bias = jnp.zeros((vocab,), dtype=jnp.float32)

    # f32 path — tight correctness check against the PyTorch forward semantics.
    logits = bert_generation_lm_head(hidden_states, decoder_weight, lm_bias)
    logits = jax.block_until_ready(logits)

    ref = hidden_states @ decoder_weight.T + lm_bias
    assert logits.shape == (batch, seq, vocab)
    assert jnp.allclose(logits, ref, atol=1e-5, rtol=1e-5)

    # bf16 path — production-style low-precision inputs, f32 MXU accumulation.
    logits_bf16 = bert_generation_lm_head(
        hidden_states.astype(jnp.bfloat16),
        decoder_weight.astype(jnp.bfloat16),
        lm_bias,
    )
    logits_bf16 = jax.block_until_ready(logits_bf16)
    assert logits_bf16.shape == (batch, seq, vocab)
    assert jnp.allclose(
        logits_bf16.astype(jnp.float32), ref, atol=2e-2, rtol=2e-2
    )

    print("KERNEL_OK")
</pallas_src>

<mosaic_0001>
module attributes {stable_mosaic.version = 11 : i64} {
  func.func @lm_head_kernel(%arg0: i32, %arg1: i32, %arg2: memref<16x32xf32, #tpu.memory_space<vmem>>, %arg3: memref<256x32xf32, #tpu.memory_space<vmem>>, %arg4: memref<1x256xf32, #tpu.memory_space<vmem>>, %arg5: memref<16x256xf32, #tpu.memory_space<vmem>>) attributes {dimension_semantics = [#tpu.dimension_semantics<parallel>, #tpu.dimension_semantics<parallel>], iteration_bounds = array<i64: 1, 1>, scalar_prefetch = 0 : i64, scratch_operands = 0 : i64, tpu.core_type = #tpu.core_type<tc>, window_params = [{transform_indices = @transform_0, window_bounds = array<i64: 16, 32>}, {transform_indices = @transform_1, window_bounds = array<i64: 256, 32>}, {transform_indices = @transform_2, window_bounds = array<i64: 1, 256>}, {transform_indices = @transform_3, window_bounds = array<i64: 16, 256>}]} {
    %c0 = arith.constant 0 : index
    %c0_0 = arith.constant 0 : index
    %0 = vector.load %arg2[%c0, %c0_0] : memref<16x32xf32, #tpu.memory_space<vmem>>, vector<16x32xf32>
    %c0_1 = arith.constant 0 : index
    %c0_2 = arith.constant 0 : index
    %1 = vector.load %arg3[%c0_1, %c0_2] : memref<256x32xf32, #tpu.memory_space<vmem>>, vector<256x32xf32>
    %cst = arith.constant dense<0.000000e+00> : vector<16x256xf32>
    %2 = tpu.matmul %0, %1, %cst {dimension_numbers = #tpu.dot_dimension_numbers<[1], [1], [0], [0], [0, 0, 1, 0], [], []>} : vector<16x32xf32>, vector<256x32xf32>, vector<16x256xf32> -> vector<16x256xf32>
    %c0_3 = arith.constant 0 : index
    %c0_4 = arith.constant 0 : index
    %3 = vector.load %arg4[%c0_3, %c0_4] : memref<1x256xf32, #tpu.memory_space<vmem>>, vector<1x256xf32>
    %4 = vector.broadcast %3 : vector<1x256xf32> to vector<16x256xf32>
    %5 = arith.addf %2, %4 : vector<16x256xf32>
    %c0_5 = arith.constant 0 : index
    %c0_6 = arith.constant 0 : index
    %6 = vector.load %arg5[%c0_5, %c0_6] : memref<16x256xf32, #tpu.memory_space<vmem>>, vector<16x256xf32>
    tpu.vector_store %arg5[%c0_5, %c0_6], %5 {strides = array<i32>} : memref<16x256xf32, #tpu.memory_space<vmem>>, vector<16x256xf32>,
    return
  }
  func.func @transform_0(%arg0: i32, %arg1: i32) -> (i32, i32) {
    %c0_i32 = arith.constant 0 : i32
    %c0_i32_0 = arith.constant 0 : i32
    return %arg0, %c0_i32 : i32, i32
  }
  func.func @transform_1(%arg0: i32, %arg1: i32) -> (i32, i32) {
    %c0_i32 = arith.constant 0 : i32
    %c0_i32_0 = arith.constant 0 : i32
    return %arg1, %c0_i32 : i32, i32
  }
  func.func @transform_2(%arg0: i32, %arg1: i32) -> (i32, i32) {
    %c0_i32 = arith.constant 0 : i32
    %c0_i32_0 = arith.constant 0 : i32
    return %c0_i32, %arg1 : i32, i32
  }
  func.func @transform_3(%arg0: i32, %arg1: i32) -> (i32, i32) {
    %c0_i32 = arith.constant 0 : i32
    return %arg0, %arg1 : i32, i32
  }
}

</mosaic_0001>

<llo_original>
// kernel: tpu_custom_call.1
$region0: #{tpu_custom_call.1}
  #allocation0 [shape = 'u32[]', space=smem, size = 0x4, offset = 0x4, fixed_abs, tag = 'smem constant byte address 0x4 - core index']
  #allocation1 [shape = 'u32[144,128]{1,0:T(1,128)}', space=vmem, size = 0x12000, scoped, tag = 'internal scratch']
  %s0 = inlined_call_operand.vmem [shape: f32[16,32], index: 0, kind: input, shape index: {}]
  %s1 = inlined_call_operand.vmem [shape: f32[256,32], index: 1, kind: input, shape index: {}]
  %s2 = inlined_call_operand.vmem [shape: f32[1,256], index: 2, kind: input, shape index: {}]
  %s3 = inlined_call_operand.hbm [shape: f32[16,256], index: 3, kind: output, shape index: {}]
  %s4 = sld [smem:[#allocation0]]
  $region22: #{tpu_custom_call.1} parent=0
    _
  %s6 = ssub.s32 1, %s4
  %s7 = scalar_select 0, %s6, %s4
  $region1: #{tpu_custom_call.1} parent=0
    #allocation2 [shape = 'u8[16384]{0}', space=vmem, size = 0x4000, scoped, tag = 'output window, operand 0, single buffered']
    #allocation3 [shape = 's32[1]{0}', space=sflag, size = 0x4, scoped, tag = 'scoped memory for tpu_custom_call.1']
    %8 = vsyncpa [#allocation3], 0
    // Predicated region
    $region2: #{tpu_custom_call.1} parent=1 // pred_check
      _
    $region3: #{tpu_custom_call.1} parent=1 // pred_check_branch
      %10 = sbr.rel (0) target = $region5
    $region4: #{tpu_custom_call.1} parent=1 // pred_region
      _
    $region5: #{tpu_custom_call.1} parent=1 // pred_fallthru
      _
    // Predicated region
    $region6: #{tpu_custom_call.1} parent=1 // pred_check
      _
    $region7: #{tpu_custom_call.1} parent=1 // pred_check_branch
      %12 = sbr.rel (0) target = $region9
    $region8: #{tpu_custom_call.1} parent=1 // pred_region
      _
    $region9: #{tpu_custom_call.1} parent=1 // pred_fallthru
      _
    // Predicated region
    $region10: #{tpu_custom_call.1} parent=1 // pred_check
      _
    $region11: #{tpu_custom_call.1} parent=1 // pred_check_branch
      %14 = sbr.rel (0) target = $region13
    $region12: #{tpu_custom_call.1} parent=1 // pred_region
      _
    $region13: #{tpu_custom_call.1} parent=1 // pred_fallthru
      _
    %v15 = vld [vmem:[%s0] sm:$0xff]
    %v16 = vld [vmem:[%s0 + $0x8] sm:$0xff]
    %v17 = vld [vmem:[%s1] sm:$0xff]
    %v18 = vld [vmem:[%s1 + $0x8] sm:$0xff]
    %v19 = vld [vmem:[%s1 + $0x10] sm:$0xff]
    %v20 = vld [vmem:[%s1 + $0x18] sm:$0xff]
    %v21 = vld [vmem:[%s1 + $0x20] sm:$0xff]
    %v22 = vld [vmem:[%s1 + $0x28] sm:$0xff]
    %v23 = vld [vmem:[%s1 + $0x30] sm:$0xff]
    %v24 = vld [vmem:[%s1 + $0x38] sm:$0xff]
    %v25 = vld [vmem:[%s1 + $0x40] sm:$0xff]
    %v26 = vld [vmem:[%s1 + $0x48] sm:$0xff]
    %v27 = vld [vmem:[%s1 + $0x50] sm:$0xff]
    %v28 = vld [vmem:[%s1 + $0x58] sm:$0xff]
    %v29 = vld [vmem:[%s1 + $0x60] sm:$0xff]
    %v30 = vld [vmem:[%s1 + $0x68] sm:$0xff]
    %v31 = vld [vmem:[%s1 + $0x70] sm:$0xff]
    %v32 = vld [vmem:[%s1 + $0x78] sm:$0xff]
    %v33 = vld [vmem:[%s1 + $0x80] sm:$0xff]
    %v34 = vld [vmem:[%s1 + $0x88] sm:$0xff]
    %v35 = vld [vmem:[%s1 + $0x90] sm:$0xff]
    %v36 = vld [vmem:[%s1 + $0x98] sm:$0xff]
    %v37 = vld [vmem:[%s1 + $0xa0] sm:$0xff]
    %v38 = vld [vmem:[%s1 + $0xa8] sm:$0xff]
    %v39 = vld [vmem:[%s1 + $0xb0] sm:$0xff]
    %v40 = vld [vmem:[%s1 + $0xb8] sm:$0xff]
    %v41 = vld [vmem:[%s1 + $0xc0] sm:$0xff]
    %v42 = vld [vmem:[%s1 + $0xc8] sm:$0xff]
    %v43 = vld [vmem:[%s1 + $0xd0] sm:$0xff]
    %v44 = vld [vmem:[%s1 + $0xd8] sm:$0xff]
    %v45 = vld [vmem:[%s1 + $0xe0] sm:$0xff]
    %v46 = vld [vmem:[%s1 + $0xe8] sm:$0xff]
    %v47 = vld [vmem:[%s1 + $0xf0] sm:$0xff]
    %v48 = vld [vmem:[%s1 + $0xf8] sm:$0xff]
    %v49 = vld [vmem:[%s2] sm:$0x3]
    %v51 = vlaneseq
    %v52 = vshrl.u32 %v51, 7
    %v53 = vsub.s32 0, %v52
    %v54 = vrot.slane %v49, %v53
    %v55 = vlaneseq
    %v56 = vshrl.u32 %v55, 7
    %v57 = vsub.s32 1, %v56
    %v58 = vrot.slane %v49, %v57
    %vm61 = vcmask 261120
    %v63 = vsel %vm61, %v15, 0
    %v66 = vsel %vm61, %v16, 0
    %v69 = vsel %vm61, %v17, 0
    %v72 = vsel %vm61, %v18, 0
    %v75 = vsel %vm61, %v19, 0
    %v78 = vsel %vm61, %v20, 0
    %v81 = vsel %vm61, %v21, 0
    %v84 = vsel %vm61, %v22, 0
    %v87 = vsel %vm61, %v23, 0
    %v90 = vsel %vm61, %v24, 0
    %v93 = vsel %vm61, %v25, 0
    %v96 = vsel %vm61, %v26, 0
    %v99 = vsel %vm61, %v27, 0
    %v102 = vsel %vm61, %v28, 0
    %v105 = vsel %vm61, %v29, 0
    %v108 = vsel %vm61, %v30, 0
    %v111 = vsel %vm61, %v31, 0
    %v114 = vsel %vm61, %v32, 0
    %v117 = vsel %vm61, %v33, 0
    %v120 = vsel %vm61, %v34, 0
    %v123 = vsel %vm61, %v35, 0
    %v126 = vsel %vm61, %v36, 0
    %v129 = vsel %vm61, %v37, 0
    %v132 = vsel %vm61, %v38, 0
    %v135 = vsel %vm61, %v39, 0
    %v138 = vsel %vm61, %v40, 0
    %v141 = vsel %vm61, %v41, 0
    %v144 = vsel %vm61, %v42, 0
    %v147 = vsel %vm61, %v43, 0
    %v150 = vsel %vm61, %v44, 0
    %v153 = vsel %vm61, %v45, 0
    %v156 = vsel %vm61, %v46, 0
    %v159 = vsel %vm61, %v47, 0
    %v162 = vsel %vm61, %v48, 0
    %164 = vmatprep.subr.mxu0 0.0
    %165 = vmatpush1.xpose.msra.mxu0 %v69
    %166 = vmatprep.subr.mxu0 0.0
    %167 = vmatpush1.xpose.msra.mxu0 %v72
    %168 = vmatprep.subr.mxu0 0.0
    %169 = vmatpush1.xpose.msra.mxu0 %v75
    %170 = vmatprep.subr.mxu0 0.0
    %171 = vmatpush1.xpose.msra.mxu0 %v78
    %172 = vmatprep.subr.mxu0 0.0
    %173 = vmatpush1.xpose.msra.mxu0 %v81
    %174 = vmatprep.subr.mxu0 0.0
    %175 = vmatpush1.xpose.msra.mxu0 %v84
    %176 = vmatprep.subr.mxu0 0.0
    %177 = vmatpush1.xpose.msra.mxu0 %v87
    %178 = vmatprep.subr.mxu0 0.0
    %179 = vmatpush1.xpose.msra.mxu0 %v90
    %180 = vmatprep.subr.mxu0 0.0
    %181 = vmatpush1.xpose.msra.mxu0 %v93
    %182 = vmatprep.subr.mxu0 0.0
    %183 = vmatpush1.xpose.msra.mxu0 %v96
    %184 = vmatprep.subr.mxu0 0.0
    %185 = vmatpush1.xpose.msra.mxu0 %v99
    %186 = vmatprep.subr.mxu0 0.0
    %187 = vmatpush1.xpose.msra.mxu0 %v102
    %188 = vmatprep.subr.mxu0 0.0
    %189 = vmatpush1.xpose.msra.mxu0 %v105
    %190 = vmatprep.subr.mxu0 0.0
    %191 = vmatpush1.xpose.msra.mxu0 %v108
    %192 = vmatprep.subr.mxu0 0.0
    %193 = vmatpush1.xpose.msra.mxu0 %v111
    %194 = vmatprep.subr.mxu0 0.0
    %195 = vmatpush1.xpose.msra.mxu0 %v114
    %196 = vmatprep.subr.mxu0 0.0
    %197 = vmatpush1.xpose.msra.mxu0 %v117
    %198 = vmatprep.subr.mxu0 0.0
    %199 = vmatpush1.xpose.msra.mxu0 %v120
    %200 = vmatprep.subr.mxu0 0.0
    %201 = vmatpush1.xpose.msra.mxu0 %v123
    %202 = vmatprep.subr.mxu0 0.0
    %203 = vmatpush1.xpose.msra.mxu0 %v126
    %204 = vmatprep.subr.mxu0 0.0
    %205 = vmatpush1.xpose.msra.mxu0 %v129
    %206 = vmatprep.subr.mxu0 0.0
    %207 = vmatpush1.xpose.msra.mxu0 %v132
    %208 = vmatprep.subr.mxu0 0.0
    %209 = vmatpush1.xpose.msra.mxu0 %v135
    %210 = vmatprep.subr.mxu0 0.0
    %211 = vmatpush1.xpose.msra.mxu0 %v138
    %212 = vmatprep.subr.mxu0 0.0
    %213 = vmatpush1.xpose.msra.mxu0 %v141
    %214 = vmatprep.subr.mxu0 0.0
    %215 = vmatpush1.xpose.msra.mxu0 %v144
    %216 = vmatprep.subr.mxu0 0.0
    %217 = vmatpush1.xpose.msra.mxu0 %v147
    %218 = vmatprep.subr.mxu0 0.0
    %219 = vmatpush1.xpose.msra.mxu0 %v150
    %220 = vmatprep.subr.mxu0 0.0
    %221 = vmatpush1.xpose.msra.mxu0 %v153
    %222 = vmatprep.subr.mxu0 0.0
    %223 = vmatpush1.xpose.msra.mxu0 %v156
    %224 = vmatprep.subr.mxu0 0.0
    %225 = vmatpush1.xpose.msra.mxu0 %v159
    %226 = vmatprep.subr.mxu0 0.0
    %227 = vmatpush1.xpose.msra.mxu0 %v162
    %228 = vmatprep.mubr.f32.mxu0 0.0
    %229 = vmatmul.mubr.f32.gmra.mrb[0].mxu0 %v63
    %v230 = vpop.f32.mrb[0].mxu0
    %v231 = vadd.f32 %v54, %v230
    %v232 = vpop.f32.mrb[0].mxu0
    %v233 = vadd.f32 %v58, %v232
    %234 = vmatprep.mubr.f32.mxu0 0.0
    %235 = vmatmul.mubr.f32.gmra.mrb[0].mxu0 %v66
    %v236 = vpop.f32.mrb[0].mxu0
    %v237 = vadd.f32 %v54, %v236
    %v238 = vpop.f32.mrb[0].mxu0
    %v239 = vadd.f32 %v58, %v238
    %240 = vdwg.mxu0
    %241 = vst [vmem:[#allocation2] sm:$0xff] %v231
    %242 = vst [vmem:[#allocation2 + $0x8] sm:$0xff] %v233
    %243 = vst [vmem:[#allocation2 + $0x10] sm:$0xff] %v237
    %244 = vst [vmem:[#allocation2 + $0x18] sm:$0xff] %v239
    // Predicated region
    $region14: #{tpu_custom_call.1} parent=1 // pred_check
      _
    $region15: #{tpu_custom_call.1} parent=1 // pred_check_branch
      %246 = sbr.rel (0) target = $region17
    $region16: #{tpu_custom_call.1} parent=1 // pred_region
      %s248 = ssub.s32 512, 512
      %249 = vsyncadd [#allocation3], %s248
      %s250 = sshll.u32 [#allocation2], 4
      %s251 = int_to_ptr.vmem [resolvable:$true] %s250
      %256 = dma.vmem_to_hbm [thread:$0]  %s251, 512, %s3, [#allocation3], 256, 256, 16
    $region17: #{tpu_custom_call.1} parent=1 // pred_fallthru
      _
    // Predicated region
    $region18: #{tpu_custom_call.1} parent=1 // pred_check
      _
    $region19: #{tpu_custom_call.1} parent=1 // pred_check_branch
      %258 = sbr.rel (0) target = $region21
    $region20: #{tpu_custom_call.1} parent=1 // pred_region
      %259 = dma.done [#allocation3], 512
    $region21: #{tpu_custom_call.1} parent=1 // pred_fallthru
      _
    %260 = vsyncpa [#allocation3], 1

</llo_original>
